<compile_context>
chip_gen: v5e
topology: v5e:2x2
jax: 0.10.0
libtpu: 0.0.40
codegen_flags: <defaults>
</compile_context>

<pallas_src>
import functools

import jax
import jax.numpy as jnp
import numpy as np
from jax.experimental import pallas as pl
from jax.experimental.pallas import tpu as pltpu


# ---------------------------------------------------------------------------
# Kernel 1: fused MLP  (fc1 -> relu -> fc2) over row-blocks of [B*N, Dx].
# ---------------------------------------------------------------------------
def _mlp_kernel(inp_ref, w1t_ref, b1_ref, w2t_ref, b2_ref, x_ref, *,
                compute_dtype):
    inp = inp_ref[...]                                       # [TR, Dx]
    h1 = jnp.dot(inp.astype(compute_dtype),
                 w1t_ref[...].astype(compute_dtype),         # [Dx, H]
                 preferred_element_type=jnp.float32)
    h1 = jnp.maximum(h1 + b1_ref[...], 0.0)                  # relu(fc1)
    x = jnp.dot(h1.astype(compute_dtype),
                w2t_ref[...].astype(compute_dtype),          # [H, K]
                preferred_element_type=jnp.float32)
    x_ref[...] = (x + b2_ref[...]).astype(x_ref.dtype)       # [TR, K]


# ---------------------------------------------------------------------------
# Kernel 2: logits = x - sinh(3A)^T @ (x + Wa) on a node-major [N, TB*K] slab.
# ---------------------------------------------------------------------------
def _adjacency_kernel(x_ref, adj_a1t_ref, wa_ref, logits_ref, *,
                      compute_dtype):
    xs = x_ref[...]                                          # [N, TB*K]
    xw = xs + wa_ref[...]                                    # + Wa (tiled once)
    mm = jnp.dot(adj_a1t_ref[...].astype(compute_dtype),     # [N, N]
                 xw.astype(compute_dtype),
                 preferred_element_type=jnp.float32)         # [N, TB*K]
    logits_ref[...] = (xs - mm).astype(logits_ref.dtype)


# ---------------------------------------------------------------------------
# Wrapper mirroring MLPEncoder.forward (rel_rec / rel_send accepted, unused).
# ---------------------------------------------------------------------------
def mlp_encoder_forward(inputs, rel_rec, rel_send, params, *,
                        rows_per_block=None, batch_per_block=None,
                        compute_dtype=jnp.float32):
    del rel_rec, rel_send  # unused by the reference forward as well
    B, N, Dx = inputs.shape
    H = params["w1"].shape[0]
    K = params["w2"].shape[0]

    # ---- wrapper-side layout plumbing (done once by XLA, outside kernels) ---
    w1t = params["w1"].T                       # [Dx, H]  (pre-transposed)
    w2t = params["w2"].T                       # [H, K]
    b1 = params["b1"].reshape(1, H)
    b2 = params["b2"].reshape(1, K)
    wa = params["wa"].reshape(1, K)

    # sinh(3A) is O(N^2) elementwise prep (it is also a module output); its
    # transpose is layout plumbing so the kernel never transposes.
    adj_a1 = jnp.sinh(3.0 * params["adj_A"]).astype(jnp.float32)
    adj_a1t = adj_a1.T

    tr = rows_per_block if rows_per_block is not None else B * N
    tb = batch_per_block if batch_per_block is not None else B
    assert (B * N) % tr == 0 and (tr % 8 == 0 or tr == B * N)
    assert B % tb == 0 and ((tb * K) % 128 == 0 or tb == B)

    # ---- kernel 1: MLP over the flattened [B*N, Dx] rows --------------------
    inp2d = inputs.reshape(B * N, Dx)
    x2d = pl.pallas_call(
        functools.partial(_mlp_kernel, compute_dtype=compute_dtype),
        out_shape=jax.ShapeDtypeStruct((B * N, K), jnp.float32),
        grid_spec=pltpu.PrefetchScalarGridSpec(
            num_scalar_prefetch=0,
            grid=((B * N) // tr,),
            in_specs=[
                pl.BlockSpec((tr, Dx), lambda i: (i, 0)),   # activations
                pl.BlockSpec((Dx, H), lambda i: (0, 0)),    # w1t (resident)
                pl.BlockSpec((1, H), lambda i: (0, 0)),     # b1
                pl.BlockSpec((H, K), lambda i: (0, 0)),     # w2t (resident)
                pl.BlockSpec((1, K), lambda i: (0, 0)),     # b2
            ],
            out_specs=pl.BlockSpec((tr, K), lambda i: (i, 0)),
        ),
        compiler_params=pltpu.CompilerParams(
            dimension_semantics=("parallel",)),
    )(inp2d, w1t, b1, w2t, b2)

    x = x2d.reshape(B, N, K)

    # node-major, lane-dense slab: slab[n, b*K + k] = x[b, n, k]
    x_slab = x2d.reshape(B, N, K).transpose(1, 0, 2).reshape(N, B * K)
    wa_rep = jnp.tile(wa, (1, tb))             # [1, tb*K]; same for every block

    # ---- kernel 2: one adjacency matmul per batch block ---------------------
    logits_slab = pl.pallas_call(
        functools.partial(_adjacency_kernel, compute_dtype=compute_dtype),
        out_shape=jax.ShapeDtypeStruct((N, B * K), jnp.float32),
        grid_spec=pltpu.PrefetchScalarGridSpec(
            num_scalar_prefetch=0,
            grid=(B // tb,),
            in_specs=[
                pl.BlockSpec((N, tb * K), lambda i: (0, i)),  # x slab block
                pl.BlockSpec((N, N), lambda i: (0, 0)),       # sinh(3A)^T
                pl.BlockSpec((1, tb * K), lambda i: (0, 0)),  # tiled Wa
            ],
            out_specs=pl.BlockSpec((N, tb * K), lambda i: (0, i)),
        ),
        compiler_params=pltpu.CompilerParams(
            dimension_semantics=("parallel",)),
    )(x_slab, adj_a1t, wa_rep)

    logits = logits_slab.reshape(N, B, K).transpose(1, 0, 2)

    adj_eye = jnp.eye(N, dtype=jnp.float32)
    return (x, logits, adj_a1, adj_eye,
            params["z"], params["z_positive"],
            params["adj_A"], params["wa"])


# ---------------------------------------------------------------------------
# Parameter init (xavier_normal_ on Linear weights, torch-default biases).
# ---------------------------------------------------------------------------
def init_params(key, n_nodes, n_xdims, n_hid, n_out, tol=0.1):
    k1, k2, k3, k4, k5 = jax.random.split(key, 5)

    def xavier_normal(k, out_f, in_f):
        std = (2.0 / (in_f + out_f)) ** 0.5
        return std * jax.random.normal(k, (out_f, in_f), jnp.float32)

    def linear_bias(k, out_f, in_f):   # U(-1/sqrt(fan_in), 1/sqrt(fan_in))
        bound = 1.0 / np.sqrt(in_f)
        return jax.random.uniform(k, (out_f,), jnp.float32, -bound, bound)

    return dict(
        w1=xavier_normal(k1, n_hid, n_xdims),
        b1=linear_bias(k2, n_hid, n_xdims),
        w2=xavier_normal(k3, n_out, n_hid),
        b2=linear_bias(k4, n_out, n_hid),
        adj_A=0.1 * jax.random.normal(k5, (n_nodes, n_nodes), jnp.float32),
        wa=jnp.zeros((n_out,), jnp.float32),                  # self.Wa
        z=jnp.float32(tol),                                   # self.z
        z_positive=jnp.ones((n_nodes, n_nodes), jnp.float32), # self.z_positive
    )


def _reference_forward(inputs, params):
    """Pure-JAX reference for correctness checking."""
    h1 = jax.nn.relu(inputs @ params["w1"].T + params["b1"])
    x = h1 @ params["w2"].T + params["b2"]
    adj_a1 = jnp.sinh(3.0 * params["adj_A"])
    adj_forz = jnp.eye(adj_a1.shape[0], dtype=jnp.float32) - adj_a1.T
    wa = params["wa"]
    logits = jnp.einsum("ij,bjk->bik", adj_forz, x + wa) - wa
    return x, logits, adj_a1


if __name__ == "__main__":
    # Small shapes consistent with the module: B samples, N graph nodes,
    # n_xdims per-node features, n_hid hidden, n_out output dims.
    B, N, N_XDIMS, N_HID, N_OUT = 16, 8, 16, 32, 16

    key = jax.random.PRNGKey(0)
    k_in, k_par, k_wa = jax.random.split(key, 3)
    inputs = jax.random.normal(k_in, (B, N, N_XDIMS), jnp.float32)
    params = init_params(k_par, N, N_XDIMS, N_HID, N_OUT, tol=0.1)
    # Wa is zero-initialized in the module; perturb it here so the Wa path is
    # actually exercised by the numerical check.
    params["wa"] = 0.1 * jax.random.normal(k_wa, (N_OUT,), jnp.float32)

    # rel_rec / rel_send are accepted but unused by the forward (as in torch).
    rel_rec = jnp.zeros((N * (N - 1), N), jnp.float32)
    rel_send = jnp.zeros((N * (N - 1), N), jnp.float32)

    fwd = jax.jit(functools.partial(mlp_encoder_forward,
                                    rows_per_block=64, batch_per_block=8))
    outs = jax.block_until_ready(fwd(inputs, rel_rec, rel_send, params))
    x, logits, adj_a1, adj_eye, z, z_pos, adj_A, wa = outs

    # Correctness check against a pure-JAX reference (f32 path).
    x_ref, logits_ref, adj_a1_ref = _reference_forward(inputs, params)
    np.testing.assert_allclose(np.asarray(x), np.asarray(x_ref),
                               rtol=1e-4, atol=1e-4)
    np.testing.assert_allclose(np.asarray(logits), np.asarray(logits_ref),
                               rtol=1e-4, atol=1e-4)
    np.testing.assert_allclose(np.asarray(adj_a1), np.asarray(adj_a1_ref),
                               rtol=1e-5, atol=1e-5)

    # Optional bf16 MXU path for v6e/v7x (f32 accumulation, looser tolerance).
    fwd_bf16 = jax.jit(functools.partial(mlp_encoder_forward,
                                         rows_per_block=64, batch_per_block=8,
                                         compute_dtype=jnp.bfloat16))
    outs_b = jax.block_until_ready(fwd_bf16(inputs, rel_rec, rel_send, params))
    x_b, logits_b = outs_b[0], outs_b[1]
    np.testing.assert_allclose(np.asarray(x_b), np.asarray(x_ref),
                               rtol=5e-2, atol=5e-2)
    np.testing.assert_allclose(np.asarray(logits_b), np.asarray(logits_ref),
                               rtol=5e-2, atol=5e-2)

    print("KERNEL_OK")
</pallas_src>

<mosaic_0001>
module attributes {stable_mosaic.version = 11 : i64} {
  func.func @_mlp_kernel(%arg0: i32, %arg1: memref<64x16xf32, #tpu.memory_space<vmem>>, %arg2: memref<16x32xf32, #tpu.memory_space<vmem>>, %arg3: memref<1x32xf32, #tpu.memory_space<vmem>>, %arg4: memref<32x16xf32, #tpu.memory_space<vmem>>, %arg5: memref<1x16xf32, #tpu.memory_space<vmem>>, %arg6: memref<64x16xf32, #tpu.memory_space<vmem>>) attributes {dimension_semantics = [#tpu.dimension_semantics<parallel>], iteration_bounds = array<i64: 2>, scalar_prefetch = 0 : i64, scratch_operands = 0 : i64, tpu.core_type = #tpu.core_type<tc>, window_params = [{transform_indices = @transform_0, window_bounds = array<i64: 64, 16>}, {pipeline_mode = #tpu.pipeline_mode<synchronous>, transform_indices = @transform_1, window_bounds = array<i64: 16, 32>}, {pipeline_mode = #tpu.pipeline_mode<synchronous>, transform_indices = @transform_2, window_bounds = array<i64: 1, 32>}, {pipeline_mode = #tpu.pipeline_mode<synchronous>, transform_indices = @transform_3, window_bounds = array<i64: 32, 16>}, {pipeline_mode = #tpu.pipeline_mode<synchronous>, transform_indices = @transform_4, window_bounds = array<i64: 1, 16>}, {transform_indices = @transform_5, window_bounds = array<i64: 64, 16>}]} {
    %c0 = arith.constant 0 : index
    %c0_0 = arith.constant 0 : index
    %0 = vector.load %arg1[%c0, %c0_0] : memref<64x16xf32, #tpu.memory_space<vmem>>, vector<64x16xf32>
    %c0_1 = arith.constant 0 : index
    %c0_2 = arith.constant 0 : index
    %1 = vector.load %arg2[%c0_1, %c0_2] : memref<16x32xf32, #tpu.memory_space<vmem>>, vector<16x32xf32>
    %cst = arith.constant dense<0.000000e+00> : vector<64x32xf32>
    %2 = tpu.matmul %0, %1, %cst {dimension_numbers = #tpu.dot_dimension_numbers<[1], [0], [0], [1], [0, 0, 1, 1], [], []>} : vector<64x16xf32>, vector<16x32xf32>, vector<64x32xf32> -> vector<64x32xf32>
    %c0_3 = arith.constant 0 : index
    %c0_4 = arith.constant 0 : index
    %3 = vector.load %arg3[%c0_3, %c0_4] : memref<1x32xf32, #tpu.memory_space<vmem>>, vector<1x32xf32>
    %4 = vector.broadcast %3 : vector<1x32xf32> to vector<64x32xf32>
    %5 = arith.addf %2, %4 : vector<64x32xf32>
    %cst_5 = arith.constant 0.000000e+00 : f32
    %6 = vector.broadcast %cst_5 : f32 to vector<64x32xf32>
    %7 = arith.maximumf %5, %6 : vector<64x32xf32>
    %c0_6 = arith.constant 0 : index
    %c0_7 = arith.constant 0 : index
    %8 = vector.load %arg4[%c0_6, %c0_7] : memref<32x16xf32, #tpu.memory_space<vmem>>, vector<32x16xf32>
    %cst_8 = arith.constant dense<0.000000e+00> : vector<64x16xf32>
    %9 = tpu.matmul %7, %8, %cst_8 {dimension_numbers = #tpu.dot_dimension_numbers<[1], [0], [0], [1], [0, 0, 1, 1], [], []>} : vector<64x32xf32>, vector<32x16xf32>, vector<64x16xf32> -> vector<64x16xf32>
    %c0_9 = arith.constant 0 : index
    %c0_10 = arith.constant 0 : index
    %10 = vector.load %arg5[%c0_9, %c0_10] : memref<1x16xf32, #tpu.memory_space<vmem>>, vector<1x16xf32>
    %11 = vector.broadcast %10 : vector<1x16xf32> to vector<64x16xf32>
    %12 = arith.addf %9, %11 : vector<64x16xf32>
    %c0_11 = arith.constant 0 : index
    %c0_12 = arith.constant 0 : index
    %13 = vector.load %arg6[%c0_11, %c0_12] : memref<64x16xf32, #tpu.memory_space<vmem>>, vector<64x16xf32>
    tpu.vector_store %arg6[%c0_11, %c0_12], %12 {strides = array<i32>} : memref<64x16xf32, #tpu.memory_space<vmem>>, vector<64x16xf32>,
    return
  }
  func.func @transform_0(%arg0: i32) -> (i32, i32) {
    %c0_i32 = arith.constant 0 : i32
    %c0_i32_0 = arith.constant 0 : i32
    return %arg0, %c0_i32 : i32, i32
  }
  func.func @transform_1(%arg0: i32) -> (i32, i32) {
    %c0_i32 = arith.constant 0 : i32
    %c0_i32_0 = arith.constant 0 : i32
    %c0_i32_1 = arith.constant 0 : i32
    return %c0_i32, %c0_i32_0 : i32, i32
  }
  func.func @transform_2(%arg0: i32) -> (i32, i32) {
    %c0_i32 = arith.constant 0 : i32
    %c0_i32_0 = arith.constant 0 : i32
    %c0_i32_1 = arith.constant 0 : i32
    return %c0_i32, %c0_i32_0 : i32, i32
  }
  func.func @transform_3(%arg0: i32) -> (i32, i32) {
    %c0_i32 = arith.constant 0 : i32
    %c0_i32_0 = arith.constant 0 : i32
    %c0_i32_1 = arith.constant 0 : i32
    return %c0_i32, %c0_i32_0 : i32, i32
  }
  func.func @transform_4(%arg0: i32) -> (i32, i32) {
    %c0_i32 = arith.constant 0 : i32
    %c0_i32_0 = arith.constant 0 : i32
    %c0_i32_1 = arith.constant 0 : i32
    return %c0_i32, %c0_i32_0 : i32, i32
  }
  func.func @transform_5(%arg0: i32) -> (i32, i32) {
    %c0_i32 = arith.constant 0 : i32
    %c0_i32_0 = arith.constant 0 : i32
    return %arg0, %c0_i32 : i32, i32
  }
}

module attributes {stable_mosaic.version = 11 : i64} {
  func.func @_adjacency_kernel(%arg0: i32, %arg1: memref<8x128xf32, #tpu.memory_space<vmem>>, %arg2: memref<8x8xf32, #tpu.memory_space<vmem>>, %arg3: memref<1x128xf32, #tpu.memory_space<vmem>>, %arg4: memref<8x128xf32, #tpu.memory_space<vmem>>) attributes {dimension_semantics = [#tpu.dimension_semantics<parallel>], iteration_bounds = array<i64: 2>, scalar_prefetch = 0 : i64, scratch_operands = 0 : i64, tpu.core_type = #tpu.core_type<tc>, window_params = [{transform_indices = @transform_0, window_bounds = array<i64: 8, 128>}, {pipeline_mode = #tpu.pipeline_mode<synchronous>, transform_indices = @transform_1, window_bounds = array<i64: 8, 8>}, {pipeline_mode = #tpu.pipeline_mode<synchronous>, transform_indices = @transform_2, window_bounds = array<i64: 1, 128>}, {transform_indices = @transform_3, window_bounds = array<i64: 8, 128>}]} {
    %c0 = arith.constant 0 : index
    %c0_0 = arith.constant 0 : index
    %0 = vector.load %arg1[%c0, %c0_0] : memref<8x128xf32, #tpu.memory_space<vmem>>, vector<8x128xf32>
    %c0_1 = arith.constant 0 : index
    %c0_2 = arith.constant 0 : index
    %1 = vector.load %arg3[%c0_1, %c0_2] : memref<1x128xf32, #tpu.memory_space<vmem>>, vector<1x128xf32>
    %2 = vector.broadcast %1 : vector<1x128xf32> to vector<8x128xf32>
    %3 = arith.addf %0, %2 : vector<8x128xf32>
    %c0_3 = arith.constant 0 : index
    %c0_4 = arith.constant 0 : index
    %4 = vector.load %arg2[%c0_3, %c0_4] : memref<8x8xf32, #tpu.memory_space<vmem>>, vector<8x8xf32>
    %cst = arith.constant dense<0.000000e+00> : vector<8x128xf32>
    %5 = tpu.matmul %4, %3, %cst {dimension_numbers = #tpu.dot_dimension_numbers<[1], [0], [0], [1], [0, 0, 1, 1], [], []>} : vector<8x8xf32>, vector<8x128xf32>, vector<8x128xf32> -> vector<8x128xf32>
    %6 = arith.subf %0, %5 : vector<8x128xf32>
    %c0_5 = arith.constant 0 : index
    %c0_6 = arith.constant 0 : index
    %7 = vector.load %arg4[%c0_5, %c0_6] : memref<8x128xf32, #tpu.memory_space<vmem>>, vector<8x128xf32>
    tpu.vector_store %arg4[%c0_5, %c0_6], %6 {strides = array<i32>} : memref<8x128xf32, #tpu.memory_space<vmem>>, vector<8x128xf32>,
    return
  }
  func.func @transform_0(%arg0: i32) -> (i32, i32) {
    %c0_i32 = arith.constant 0 : i32
    %c0_i32_0 = arith.constant 0 : i32
    return %c0_i32, %arg0 : i32, i32
  }
  func.func @transform_1(%arg0: i32) -> (i32, i32) {
    %c0_i32 = arith.constant 0 : i32
    %c0_i32_0 = arith.constant 0 : i32
    %c0_i32_1 = arith.constant 0 : i32
    return %c0_i32, %c0_i32_0 : i32, i32
  }
  func.func @transform_2(%arg0: i32) -> (i32, i32) {
    %c0_i32 = arith.constant 0 : i32
    %c0_i32_0 = arith.constant 0 : i32
    %c0_i32_1 = arith.constant 0 : i32
    return %c0_i32, %c0_i32_0 : i32, i32
  }
  func.func @transform_3(%arg0: i32) -> (i32, i32) {
    %c0_i32 = arith.constant 0 : i32
    %c0_i32_0 = arith.constant 0 : i32
    return %c0_i32, %arg0 : i32, i32
  }
}

</mosaic_0001>

<llo_original>
// kernel: mlp_encoder_forward.2
$region0: #{mlp_encoder_forward.2}
  #allocation0 [shape = 'u32[]', space=smem, size = 0x4, offset = 0x4, fixed_abs, tag = 'smem constant byte address 0x4 - core index']
  #allocation1 [shape = 'u32[72,128]{1,0:T(1,128)}', space=vmem, size = 0x9000, scoped, tag = 'internal scratch']
  %s0 = inlined_call_operand.hbm [shape: f32[128,16], index: 0, kind: input, shape index: {}]
  %s1 = inlined_call_operand.vmem [shape: f32[16,32], index: 1, kind: input, shape index: {}]
  %s2 = inlined_call_operand.vmem [shape: f32[1,32], index: 2, kind: input, shape index: {}]
  %s3 = inlined_call_operand.vmem [shape: f32[32,16], index: 3, kind: input, shape index: {}]
  %s4 = inlined_call_operand.vmem [shape: f32[1,16], index: 4, kind: input, shape index: {}]
  %s5 = inlined_call_operand.vmem [shape: f32[128,16], index: 5, kind: output, shape index: {}]
  %s6 = sld [smem:[#allocation0]]
  $region57: #{mlp_encoder_forward.2} parent=0
    _
  %s8 = ssub.s32 1, %s6
  %s9 = scalar_select 0, %s8, %s6
  $region1: #{mlp_encoder_forward.2} parent=0
    #allocation2 [shape = 'u8[65536]{0}', space=vmem, size = 0x10000, scoped, tag = 'input window, operand 0']
    #allocation3 [shape = 's32[2]{0}', space=sflag, size = 0x8, scoped, tag = 'scoped memory for mlp_encoder_forward.2']
    %10 = vsyncpa [#allocation3], 0
    %s11 = scalar_lea.sflag [#allocation3], 1
    %12 = vsyncpa %s11, 0
    loop: start=0, step=1, limit=4
    $region2: #{mlp_encoder_forward.2} parent=1 // loop_pre_header
      _
    $region3: #{mlp_encoder_forward.2} parent=1 // loop_header
      %s14 = sphi 0, %s18
      %p15 = scmp.ge.s32.totalorder %s14, 4
      %s24 = sphi 0, %s26
      %s27 = sphi 0, %s24
      %s28 = sphi 0, %s27
      %s44 = sphi 0, %s28
      %s48 = sphi 0, %s48
      %s50 = sphi 0, %s48
      %s51 = sphi 0, %s50
      %s65 = sphi 0, %s51
      %s69 = sphi 0, %s69
      %s71 = sphi 0, %s69
      %s72 = sphi 0, %s71
      %s86 = sphi 0, %s72
      %s90 = sphi 0, %s90
      %s92 = sphi 0, %s90
      %s93 = sphi 0, %s92
      %s107 = sphi 0, %s93
      %s111 = sphi 0, %s111
      %s113 = sphi 0, %s111
      %s114 = sphi 0, %s113
      %s128 = sphi 0, %s114
      %s134 = sphi 0, %s136
      %s137 = sphi 0, %s134
      %s138 = sphi 0, %s137
      %s154 = sphi 0, %s138
    $region4: #{mlp_encoder_forward.2} parent=1 // loop_header_branch
      %17 = sbr.rel (%p15) target = $region8
    $region5: #{mlp_encoder_forward.2} parent=1 // loop_body
      %s19 = ssub.s32 %s14, 1
      %s20 = ssub.s32 %s14, 2
      %s21 = sadd.s32 %s14, 1
      %s22 = ssub.s32 %s14, %s21
      %p23 = scmp.eq.s32.totalorder %s22, 0
      %s25 = sadd.s32 %s24, 1
      %s26 = scalar_select %p23, %s24, %s25
      %p29 = pneg %p23
      %p30 = scmp.eq.s32.totalorder %s14, 1
      %p31 = por %p29, %p30
      %p32 = scmp.ne.s32.totalorder %s24, %s27
      %p33 = scmp.eq.s32.totalorder %s14, 0
      %p34 = por %p32, %p33
      %p35 = scmp.ne.s32.totalorder %s24, %s27
      %p36 = scmp.eq.s32.totalorder %s19, 1
      %p37 = por %p35, %p36
      %p38 = scmp.ne.s32.totalorder %s27, %s28
      %p39 = scmp.eq.s32.totalorder %s19, 0
      %p40 = por %p38, %p39
      %p41 = scmp.ne.s32.totalorder %s27, %s28
      %p42 = scmp.eq.s32.totalorder %s20, 1
      %p43 = por %p41, %p42
      %p45 = scmp.ne.s32.totalorder %s28, %s44
      %p46 = scmp.eq.s32.totalorder %s20, 0
      %p47 = por %p45, %p46
      %s49 = sadd.s32 %s48, 1
      %p52 = scmp.eq.s32.totalorder %s14, 1
      %p53 = scmp.ne.s32.totalorder %s48, %s50
      %p54 = scmp.eq.s32.totalorder %s14, 0
      %p55 = por %p53, %p54
      %p56 = scmp.ne.s32.totalorder %s48, %s50
      %p57 = scmp.eq.s32.totalorder %s19, 1
      %p58 = por %p56, %p57
      %p59 = scmp.ne.s32.totalorder %s50, %s51
      %p60 = scmp.eq.s32.totalorder %s19, 0
      %p61 = por %p59, %p60
      %p62 = scmp.ne.s32.totalorder %s50, %s51
      %p63 = scmp.eq.s32.totalorder %s20, 1
      %p64 = por %p62, %p63
      %p66 = scmp.ne.s32.totalorder %s51, %s65
      %p67 = scmp.eq.s32.totalorder %s20, 0
      %p68 = por %p66, %p67
      %s70 = sadd.s32 %s69, 1
      %p73 = scmp.eq.s32.totalorder %s14, 1
      %p74 = scmp.ne.s32.totalorder %s69, %s71
      %p75 = scmp.eq.s32.totalorder %s14, 0
      %p76 = por %p74, %p75
      %p77 = scmp.ne.s32.totalorder %s69, %s71
      %p78 = scmp.eq.s32.totalorder %s19, 1
      %p79 = por %p77, %p78
      %p80 = scmp.ne.s32.totalorder %s71, %s72
      %p81 = scmp.eq.s32.totalorder %s19, 0
      %p82 = por %p80, %p81
      %p83 = scmp.ne.s32.totalorder %s71, %s72
      %p84 = scmp.eq.s32.totalorder %s20, 1
      %p85 = por %p83, %p84
      %p87 = scmp.ne.s32.totalorder %s72, %s86
      %p88 = scmp.eq.s32.totalorder %s20, 0
      %p89 = por %p87, %p88
      %s91 = sadd.s32 %s90, 1
      %p94 = scmp.eq.s32.totalorder %s14, 1
      %p95 = scmp.ne.s32.totalorder %s90, %s92
      %p96 = scmp.eq.s32.totalorder %s14, 0
      %p97 = por %p95, %p96
      %p98 = scmp.ne.s32.totalorder %s90, %s92
      %p99 = scmp.eq.s32.totalorder %s19, 1
      %p100 = por %p98, %p99
      %p101 = scmp.ne.s32.totalorder %s92, %s93
      %p102 = scmp.eq.s32.totalorder %s19, 0
      %p103 = por %p101, %p102
      %p104 = scmp.ne.s32.totalorder %s92, %s93
      %p105 = scmp.eq.s32.totalorder %s20, 1
      %p106 = por %p104, %p105
      %p108 = scmp.ne.s32.totalorder %s93, %s107
      %p109 = scmp.eq.s32.totalorder %s20, 0
      %p110 = por %p108, %p109
      %s112 = sadd.s32 %s111, 1
      %p115 = scmp.eq.s32.totalorder %s14, 1
      %p116 = scmp.ne.s32.totalorder %s111, %s113
      %p117 = scmp.eq.s32.totalorder %s14, 0
      %p118 = por %p116, %p117
      %p119 = scmp.ne.s32.totalorder %s111, %s113
      %p120 = scmp.eq.s32.totalorder %s19, 1
      %p121 = por %p119, %p120
      %p122 = scmp.ne.s32.totalorder %s113, %s114
      %p123 = scmp.eq.s32.totalorder %s19, 0
      %p124 = por %p122, %p123
      %p125 = scmp.ne.s32.totalorder %s113, %s114
      %p126 = scmp.eq.s32.totalorder %s20, 1
      %p127 = por %p125, %p126
      %p129 = scmp.ne.s32.totalorder %s114, %s128
      %p130 = scmp.eq.s32.totalorder %s20, 0
      %p131 = por %p129, %p130
      %s132 = ssub.s32 %s14, %s21
      %p133 = scmp.eq.s32.totalorder %s132, 0
      %s135 = sadd.s32 %s134, 1
      %s136 = scalar_select %p133, %s134, %s135
      %p139 = pneg %p133
      %p140 = scmp.eq.s32.totalorder %s14, 1
      %p141 = por %p139, %p140
      %p142 = scmp.ne.s32.totalorder %s134, %s137
      %p143 = scmp.eq.s32.totalorder %s14, 0
      %p144 = por %p142, %p143
      %p145 = scmp.ne.s32.totalorder %s134, %s137
      %p146 = scmp.eq.s32.totalorder %s19, 1
      %p147 = por %p145, %p146
      %p148 = scmp.ne.s32.totalorder %s137, %s138
      %p149 = scmp.eq.s32.totalorder %s19, 0
      %p150 = por %p148, %p149
      %p151 = scmp.ne.s32.totalorder %s137, %s138
      %p152 = scmp.eq.s32.totalorder %s20, 1
      %p153 = por %p151, %p152
      %p155 = scmp.ne.s32.totalorder %s138, %s154
      %p156 = scmp.eq.s32.totalorder %s20, 0
      %p157 = por %p155, %p156
      %p158 = scmp.le.s32.totalorder 1, %s14
      %p159 = scmp.lt.s32.totalorder %s14, 3
      %p160 = pnand %p158, %p159
      %p161 = pneg %p160
      // Predicated region
      $region9: #{mlp_encoder_forward.2} parent=5 // pred_check
        _
      $region10: #{mlp_encoder_forward.2} parent=5 // pred_check_branch
        %163 = sbr.rel (%p160) target = $region12
      $region11: #{mlp_encoder_forward.2} parent=5 // pred_region
        %s164 = ssub.s32 %s14, 1
        // Predicated region
        $region13: #{mlp_encoder_forward.2} parent=11 // pred_check
          %p165 = pneg %p61
        $region14: #{mlp_encoder_forward.2} parent=11 // pred_check_branch
          %167 = sbr.rel (%p165) target = $region16
        $region15: #{mlp_encoder_forward.2} parent=11 // pred_region
          _
        $region16: #{mlp_encoder_forward.2} parent=11 // pred_fallthru
          _
        // Predicated region
        $region17: #{mlp_encoder_forward.2} parent=11 // pred_check
          %p168 = pneg %p82
        $region18: #{mlp_encoder_forward.2} parent=11 // pred_check_branch
          %170 = sbr.rel (%p168) target = $region20
        $region19: #{mlp_encoder_forward.2} parent=11 // pred_region
          _
        $region20: #{mlp_encoder_forward.2} parent=11 // pred_fallthru
          _
        // Predicated region
        $region21: #{mlp_encoder_forward.2} parent=11 // pred_check
          %p171 = pneg %p103
        $region22: #{mlp_encoder_forward.2} parent=11 // pred_check_branch
          %173 = sbr.rel (%p171) target = $region24
        $region23: #{mlp_encoder_forward.2} parent=11 // pred_region
          _
        $region24: #{mlp_encoder_forward.2} parent=11 // pred_fallthru
          _
        // Predicated region
        $region25: #{mlp_encoder_forward.2} parent=11 // pred_check
          %p174 = pneg %p124
        $region26: #{mlp_encoder_forward.2} parent=11 // pred_check_branch
          %176 = sbr.rel (%p174) target = $region28
        $region27: #{mlp_encoder_forward.2} parent=11 // pred_region
          _
        $region28: #{mlp_encoder_forward.2} parent=11 // pred_fallthru
          _
      $region12: #{mlp_encoder_forward.2} parent=5 // pred_fallthru
        _
      %p177 = scmp.lt.s32.totalorder %s14, 2
      // Predicated region
      $region29: #{mlp_encoder_forward.2} parent=5 // pred_check
        %p178 = pneg %p177
      $region30: #{mlp_encoder_forward.2} parent=5 // pred_check_branch
        %180 = sbr.rel (%p178) target = $region32
      $region31: #{mlp_encoder_forward.2} parent=5 // pred_region
        // Predicated region
        $region33: #{mlp_encoder_forward.2} parent=31 // pred_check
          %p181 = pneg %p34
        $region34: #{mlp_encoder_forward.2} parent=31 // pred_check_branch
          %183 = sbr.rel (%p181) target = $region36
        $region35: #{mlp_encoder_forward.2} parent=31 // pred_region
          %s184 = sand.u32 %s24, 1
          %s185 = scalar_lea.sflag [#allocation3], %s184
          %s186 = sand.u32 %s24, 1
          %s187 = smul.addr %s186, 64
          %s188 = scalar_lea.vmem [#allocation2], %s187
          %s189 = smul.u32 8, %s14
          %191 = vsyncadd %s185, 0
          %s192 = smul.addr %s189, 8
          %s193 = scalar_lea.hbm %s0, %s192
          %s194 = sshll.u32 %s193, 4
          %s195 = int_to_ptr.hbm [resolvable:$true] %s194
          %s196 = sshll.u32 %s188, 4
          %s197 = int_to_ptr.vmem [resolvable:$true] %s196
          %202 = dma.hbm_to_vmem [thread:$0]  %s195, 1024, %s197, %s185, 128, 128, 8
        $region36: #{mlp_encoder_forward.2} parent=31 // pred_fallthru
          _
      $region32: #{mlp_encoder_forward.2} parent=5 // pred_fallthru
        _
      %p203 = scmp.le.s32.totalorder 1, %s14
      %p204 = scmp.lt.s32.totalorder %s14, 3
      %p205 = pnand %p203, %p204
      %p206 = pneg %p205
      // Predicated region
      $region37: #{mlp_encoder_forward.2} parent=5 // pred_check
        _
      $region38: #{mlp_encoder_forward.2} parent=5 // pred_check_branch
        %208 = sbr.rel (%p205) target = $region40
      $region39: #{mlp_encoder_forward.2} parent=5 // pred_region
        %s209 = ssub.s32 %s14, 1
        %s210 = sand.u32 %s27, 1
        %s211 = scalar_lea.sflag [#allocation3], %s210
        %s212 = sand.u32 %s27, 1
        %s213 = smul.addr %s212, 64
        %s214 = scalar_lea.vmem [#allocation2], %s213
        // Predicated region
        $region41: #{mlp_encoder_forward.2} parent=39 // pred_check
          %p215 = pneg %p40
        $region42: #{mlp_encoder_forward.2} parent=39 // pred_check_branch
          %217 = sbr.rel (%p215) target = $region44
        $region43: #{mlp_encoder_forward.2} parent=39 // pred_region
          %219 = dma.done %s211, 1024
        $region44: #{mlp_encoder_forward.2} parent=39 // pred_fallthru
          _
        %s220 = sand.u32 %s27, 1
        %s221 = scalar_lea.sflag [#allocation3], %s220
        %s222 = sand.u32 %s27, 1
        %s223 = smul.addr %s222, 64
        %s224 = scalar_lea.vmem [#allocation2], %s223
        %p225 = pneg %p40
        %p226 = pneg %p37
        %p227 = pneg %p61
        %p228 = pneg %p58
        %p229 = pneg %p82
        %p230 = pneg %p79
        %p231 = pneg %p103
        %p232 = pneg %p100
        %p233 = pneg %p124
        %p234 = pneg %p121
        %p235 = pneg %p150
        %p236 = pneg %p147
        %s237 = smul.u32 8, %s19
        %p238 = scmp.lt.s32.totalorder %s237, 15
        %s239 = scalar_select %p238, %s237, 15
        %s240 = smul.addr %s239, 8
        %s241 = scalar_lea.vmem %s5, %s240
        %s242 = smul.u32 8, %s19
        %s243 = smul.u32 8, %s19
        %p244 = scmp.lt.s32.totalorder %s243, 15
        %s245 = scalar_select %p244, %s243, 15
        %s246 = smul.addr %s245, 8
        %s247 = scalar_lea.vmem %s5, %s246
        %s248 = smul.u32 8, %s19
        %v249 = vld [vmem:[%s214] sm:$0xff]
        %v250 = vld [vmem:[%s214 + $0x8] sm:$0xff]
        %v251 = vld [vmem:[%s214 + $0x10] sm:$0xff]
        %v252 = vld [vmem:[%s214 + $0x18] sm:$0xff]
        %v253 = vld [vmem:[%s214 + $0x20] sm:$0xff]
        %v254 = vld [vmem:[%s214 + $0x28] sm:$0xff]
        %v255 = vld [vmem:[%s214 + $0x30] sm:$0xff]
        %v256 = vld [vmem:[%s214 + $0x38] sm:$0xff]
        %v257 = vld [vmem:[%s1] sm:$0xff]
        %v258 = vld [vmem:[%s1 + $0x8] sm:$0xff]
        %v259 = vld [vmem:[%s2] sm:$0x1]
        %v261 = vperm.slane %v259, 0
        %vm263 = vcmask 130048
        %v265 = vsel %vm263, %v249, 0
        %v268 = vsel %vm263, %v250, 0
        %v271 = vsel %vm263, %v251, 0
        %v274 = vsel %vm263, %v252, 0
        %v277 = vsel %vm263, %v253, 0
        %v280 = vsel %vm263, %v254, 0
        %v283 = vsel %vm263, %v255, 0
        %v286 = vsel %vm263, %v256, 0
        %288 = vmatpush.msra.mxu0 0.0
        %289 = vmatpush.msra.mxu0 0.0
        %290 = vmatpush.msra.mxu0 0.0
        %291 = vmatpush.msra.mxu0 0.0
        %292 = vmatpush.msra.mxu0 0.0
        %293 = vmatpush.msra.mxu0 0.0
        %294 = vmatpush.msra.mxu0 0.0
        %295 = vmatpush.msra.mxu0 0.0
        %296 = vmatpush.msra.mxu0 0.0
        %297 = vmatpush.msra.mxu0 0.0
        %298 = vmatpush.msra.mxu0 0.0
        %299 = vmatpush.msra.mxu0 0.0
        %300 = vmatpush.msra.mxu0 0.0
        %301 = vmatpush.msra.mxu0 0.0
        %302 = vmatpush.msra.mxu0 %v258
        %303 = vmatpush.msra.mxu0 %v257
        %304 = vmatmul.f32.gmra.mxu0 %v265
        %v305 = vpop.f32.mrf.mxu0
        %v306 = vadd.f32 %v261, %v305
        %307 = vmatmul.f32.gmra.mxu0 %v268
        %v308 = vpop.f32.mrf.mxu0
        %v309 = vadd.f32 %v261, %v308
        %310 = vmatmul.f32.gmra.mxu0 %v271
        %v311 = vpop.f32.mrf.mxu0
        %v312 = vadd.f32 %v261, %v311
        %313 = vmatmul.f32.gmra.mxu0 %v274
        %v314 = vpop.f32.mrf.mxu0
        %v315 = vadd.f32 %v261, %v314
        %316 = vmatmul.f32.gmra.mxu0 %v277
        %v317 = vpop.f32.mrf.mxu0
        %v318 = vadd.f32 %v261, %v317
        %319 = vmatmul.f32.gmra.mxu0 %v280
        %v320 = vpop.f32.mrf.mxu0
        %v321 = vadd.f32 %v261, %v320
        %322 = vmatmul.f32.gmra.mxu0 %v283
        %v323 = vpop.f32.mrf.mxu0
        %v324 = vadd.f32 %v261, %v323
        %325 = vmatmul.f32.gmra.mxu0 %v286
        %v326 = vpop.f32.mrf.mxu0
        %v327 = vadd.f32 %v261, %v326
        %328 = vdwg.mxu0
        %v329 = vmax.f32 %v306, 0.0
        %v330 = vmax.f32 %v309, 0.0
        %v331 = vmax.f32 %v312, 0.0
        %v332 = vmax.f32 %v315, 0.0
        %v333 = vmax.f32 %v318, 0.0
        %v334 = vmax.f32 %v321, 0.0
        %v335 = vmax.f32 %v324, 0.0
        %v336 = vmax.f32 %v327, 0.0
        %v337 = vld [vmem:[%s3] sm:$0xff]
        %v338 = vld [vmem:[%s3 + $0x8] sm:$0xff]
        %v339 = vld [vmem:[%s3 + $0x10] sm:$0xff]
        %v340 = vld [vmem:[%s3 + $0x18] sm:$0xff]
        %v341 = vld [vmem:[%s4] sm:$0x1]
        %v343 = vperm.slane %v341, 0
        %vm345 = vcmask 261120
        %v347 = vsel %vm345, %v329, 0
        %v350 = vsel %vm345, %v330, 0
        %v353 = vsel %vm345, %v331, 0
        %v356 = vsel %vm345, %v332, 0
        %v359 = vsel %vm345, %v333, 0
        %v362 = vsel %vm345, %v334, 0
        %v365 = vsel %vm345, %v335, 0
        %v368 = vsel %vm345, %v336, 0
        %370 = vmatpush.msra.mxu0 0.0
        %371 = vmatpush.msra.mxu0 0.0
        %372 = vmatpush.msra.mxu0 0.0
        %373 = vmatpush.msra.mxu0 0.0
        %374 = vmatpush.msra.mxu0 0.0
        %375 = vmatpush.msra.mxu0 0.0
        %376 = vmatpush.msra.mxu0 0.0
        %377 = vmatpush.msra.mxu0 0.0
        %378 = vmatpush.msra.mxu0 0.0
        %379 = vmatpush.msra.mxu0 0.0
        %380 = vmatpush.msra.mxu0 0.0
        %381 = vmatpush.msra.mxu0 0.0
        %382 = vmatpush.msra.mxu0 %v340
        %383 = vmatpush.msra.mxu0 %v339
        %384 = vmatpush.msra.mxu0 %v338
        %385 = vmatpush.msra.mxu0 %v337
        %386 = vmatmul.f32.gmra.mxu0 %v347
        %v387 = vpop.f32.mrf.mxu0
        %v388 = vadd.f32 %v343, %v387
        %389 = vmatmul.f32.gmra.mxu0 %v350
        %v390 = vpop.f32.mrf.mxu0
        %v391 = vadd.f32 %v343, %v390
        %392 = vmatmul.f32.gmra.mxu0 %v353
        %v393 = vpop.f32.mrf.mxu0
        %v394 = vadd.f32 %v343, %v393
        %395 = vmatmul.f32.gmra.mxu0 %v356
        %v396 = vpop.f32.mrf.mxu0
        %v397 = vadd.f32 %v343, %v396
        %398 = vmatmul.f32.gmra.mxu0 %v359
        %v399 = vpop.f32.mrf.mxu0
        %v400 = vadd.f32 %v343, %v399
        %401 = vmatmul.f32.gmra.mxu0 %v362
        %v402 = vpop.f32.mrf.mxu0
        %v403 = vadd.f32 %v343, %v402
        %404 = vmatmul.f32.gmra.mxu0 %v365
        %v405 = vpop.f32.mrf.mxu0
        %v406 = vadd.f32 %v343, %v405
        %407 = vmatmul.f32.gmra.mxu0 %v368
        %v408 = vpop.f32.mrf.mxu0
        %v409 = vadd.f32 %v343, %v408
        %410 = vdwg.mxu0
        %411 = vst.msk [vmem:[%s247] sm:$0xff] %vm263, %v388
        %412 = vst.msk [vmem:[%s247 + $0x8] sm:$0xff] %vm263, %v391
        %413 = vst.msk [vmem:[%s247 + $0x10] sm:$0xff] %vm263, %v394
        %414 = vst.msk [vmem:[%s247 + $0x18] sm:$0xff] %vm263, %v397
        %415 = vst.msk [vmem:[%s247 + $0x20] sm:$0xff] %vm263, %v400
        %416 = vst.msk [vmem:[%s247 + $0x28] sm:$0xff] %vm263, %v403
        %417 = vst.msk [vmem:[%s247 + $0x30] sm:$0xff] %vm263, %v406
        %418 = vst.msk [vmem:[%s247 + $0x38] sm:$0xff] %vm263, %v409
        %s419 = smul.u32 8, %s19
        %p420 = scmp.lt.s32.totalorder %s419, 15
        %s421 = scalar_select %p420, %s419, 15
        %s422 = smul.addr %s421, 8
        %s423 = scalar_lea.vmem %s5, %s422
        // Predicated region
        $region45: #{mlp_encoder_forward.2} parent=39 // pred_check
          %p424 = pneg %p147
        $region46: #{mlp_encoder_forward.2} parent=39 // pred_check_branch
          %426 = sbr.rel (%p424) target = $region48
        $region47: #{mlp_encoder_forward.2} parent=39 // pred_region
          %s427 = smul.u32 8, %s19
        $region48: #{mlp_encoder_forward.2} parent=39 // pred_fallthru
          _
      $region40: #{mlp_encoder_forward.2} parent=5 // pred_fallthru
        _
      %p428 = scmp.le.s32.totalorder 2, %s14
      // Predicated region
      $region49: #{mlp_encoder_forward.2} parent=5 // pred_check
        %p429 = pneg %p428
      $region50: #{mlp_encoder_forward.2} parent=5 // pred_check_branch
        %431 = sbr.rel (%p429) target = $region52
      $region51: #{mlp_encoder_forward.2} parent=5 // pred_region
        %s432 = ssub.s32 %s14, 2
        // Predicated region
        $region53: #{mlp_encoder_forward.2} parent=51 // pred_check
          %p433 = pneg %p153
        $region54: #{mlp_encoder_forward.2} parent=51 // pred_check_branch
          %435 = sbr.rel (%p433) target = $region56
        $region55: #{mlp_encoder_forward.2} parent=51 // pred_region
          %s436 = smul.u32 8, %s20
          %p437 = scmp.lt.s32.totalorder %s436, 15
          %s438 = scalar_select %p437, %s436, 15
          %s439 = smul.addr %s438, 8
          %s440 = scalar_lea.vmem %s5, %s439
        $region56: #{mlp_encoder_forward.2} parent=51 // pred_fallthru
          _
      $region52: #{mlp_encoder_forward.2} parent=5 // pred_fallthru
        _
    $region6: #{mlp_encoder_forward.2} parent=1 // loop_footer
      %s18 = sadd.s32 1, %s14
    $region7: #{mlp_encoder_forward.2} parent=1 // loop_footer_branch
      %13 = sbr.rel target = $region3
    $region8: #{mlp_encoder_forward.2} parent=1 // loop_exit
      _
    %441 = vsyncpa [#allocation3], 1
    %s442 = scalar_lea.sflag [#allocation3], 1
    %443 = vsyncpa %s442, 1

// kernel: mlp_encoder_forward.3
$region0: #{mlp_encoder_forward.3}
  #allocation0 [shape = 'u32[]', space=smem, size = 0x4, offset = 0x4, fixed_abs, tag = 'smem constant byte address 0x4 - core index']
  #allocation1 [shape = 'u32[72,128]{1,0:T(1,128)}', space=vmem, size = 0x9000, scoped, tag = 'internal scratch']
  %s0 = inlined_call_operand.vmem [shape: f32[8,256], index: 0, kind: input, shape index: {}]
  %s1 = inlined_call_operand.vmem [shape: f32[8,8], index: 1, kind: input, shape index: {}]
  %s2 = inlined_call_operand.vmem [shape: f32[1,128], index: 2, kind: input, shape index: {}]
  %s3 = inlined_call_operand.vmem [shape: f32[8,256], index: 3, kind: output, shape index: {}]
  %s4 = sld [smem:[#allocation0]]
  $region45: #{mlp_encoder_forward.3} parent=0
    _
  %s6 = ssub.s32 1, %s4
  %s7 = scalar_select 0, %s6, %s4
  loop: start=0, step=1, limit=4
  $region2: #{mlp_encoder_forward.3} parent=0 // loop_pre_header
    _
  $region3: #{mlp_encoder_forward.3} parent=0 // loop_header
    %s9 = sphi 0, %s13
    %p10 = scmp.ge.s32.totalorder %s9, 4
    %s19 = sphi 0, %s21
    %s22 = sphi 0, %s19
    %s23 = sphi 0, %s22
    %s39 = sphi 0, %s23
    %s43 = sphi 0, %s43
    %s45 = sphi 0, %s43
    %s46 = sphi 0, %s45
    %s60 = sphi 0, %s46
    %s64 = sphi 0, %s64
    %s66 = sphi 0, %s64
    %s67 = sphi 0, %s66
    %s81 = sphi 0, %s67
    %s87 = sphi 0, %s89
    %s90 = sphi 0, %s87
    %s91 = sphi 0, %s90
    %s107 = sphi 0, %s91
  $region4: #{mlp_encoder_forward.3} parent=0 // loop_header_branch
    %12 = sbr.rel (%p10) target = $region8
  $region5: #{mlp_encoder_forward.3} parent=0 // loop_body
    %s14 = ssub.s32 %s9, 1
    %s15 = ssub.s32 %s9, 2
    %s16 = sadd.s32 %s9, 1
    %s17 = ssub.s32 %s9, %s16
    %p18 = scmp.eq.s32.totalorder %s17, 0
    %s20 = sadd.s32 %s19, 1
    %s21 = scalar_select %p18, %s19, %s20
    %p24 = pneg %p18
    %p25 = scmp.eq.s32.totalorder %s9, 1
    %p26 = por %p24, %p25
    %p27 = scmp.ne.s32.totalorder %s19, %s22
    %p28 = scmp.eq.s32.totalorder %s9, 0
    %p29 = por %p27, %p28
    %p30 = scmp.ne.s32.totalorder %s19, %s22
    %p31 = scmp.eq.s32.totalorder %s14, 1
    %p32 = por %p30, %p31
    %p33 = scmp.ne.s32.totalorder %s22, %s23
    %p34 = scmp.eq.s32.totalorder %s14, 0
    %p35 = por %p33, %p34
    %p36 = scmp.ne.s32.totalorder %s22, %s23
    %p37 = scmp.eq.s32.totalorder %s15, 1
    %p38 = por %p36, %p37
    %p40 = scmp.ne.s32.totalorder %s23, %s39
    %p41 = scmp.eq.s32.totalorder %s15, 0
    %p42 = por %p40, %p41
    %s44 = sadd.s32 %s43, 1
    %p47 = scmp.eq.s32.totalorder %s9, 1
    %p48 = scmp.ne.s32.totalorder %s43, %s45
    %p49 = scmp.eq.s32.totalorder %s9, 0
    %p50 = por %p48, %p49
    %p51 = scmp.ne.s32.totalorder %s43, %s45
    %p52 = scmp.eq.s32.totalorder %s14, 1
    %p53 = por %p51, %p52
    %p54 = scmp.ne.s32.totalorder %s45, %s46
    %p55 = scmp.eq.s32.totalorder %s14, 0
    %p56 = por %p54, %p55
    %p57 = scmp.ne.s32.totalorder %s45, %s46
    %p58 = scmp.eq.s32.totalorder %s15, 1
    %p59 = por %p57, %p58
    %p61 = scmp.ne.s32.totalorder %s46, %s60
    %p62 = scmp.eq.s32.totalorder %s15, 0
    %p63 = por %p61, %p62
    %s65 = sadd.s32 %s64, 1
    %p68 = scmp.eq.s32.totalorder %s9, 1
    %p69 = scmp.ne.s32.totalorder %s64, %s66
    %p70 = scmp.eq.s32.totalorder %s9, 0
    %p71 = por %p69, %p70
    %p72 = scmp.ne.s32.totalorder %s64, %s66
    %p73 = scmp.eq.s32.totalorder %s14, 1
    %p74 = por %p72, %p73
    %p75 = scmp.ne.s32.totalorder %s66, %s67
    %p76 = scmp.eq.s32.totalorder %s14, 0
    %p77 = por %p75, %p76
    %p78 = scmp.ne.s32.totalorder %s66, %s67
    %p79 = scmp.eq.s32.totalorder %s15, 1
    %p80 = por %p78, %p79
    %p82 = scmp.ne.s32.totalorder %s67, %s81
    %p83 = scmp.eq.s32.totalorder %s15, 0
    %p84 = por %p82, %p83
    %s85 = ssub.s32 %s9, %s16
    %p86 = scmp.eq.s32.totalorder %s85, 0
    %s88 = sadd.s32 %s87, 1
    %s89 = scalar_select %p86, %s87, %s88
    %p92 = pneg %p86
    %p93 = scmp.eq.s32.totalorder %s9, 1
    %p94 = por %p92, %p93
    %p95 = scmp.ne.s32.totalorder %s87, %s90
    %p96 = scmp.eq.s32.totalorder %s9, 0
    %p97 = por %p95, %p96
    %p98 = scmp.ne.s32.totalorder %s87, %s90
    %p99 = scmp.eq.s32.totalorder %s14, 1
    %p100 = por %p98, %p99
    %p101 = scmp.ne.s32.totalorder %s90, %s91
    %p102 = scmp.eq.s32.totalorder %s14, 0
    %p103 = por %p101, %p102
    %p104 = scmp.ne.s32.totalorder %s90, %s91
    %p105 = scmp.eq.s32.totalorder %s15, 1
    %p106 = por %p104, %p105
    %p108 = scmp.ne.s32.totalorder %s91, %s107
    %p109 = scmp.eq.s32.totalorder %s15, 0
    %p110 = por %p108, %p109
    %p111 = scmp.le.s32.totalorder 1, %s9
    %p112 = scmp.lt.s32.totalorder %s9, 3
    %p113 = pnand %p111, %p112
    %p114 = pneg %p113
    // Predicated region
    $region9: #{mlp_encoder_forward.3} parent=5 // pred_check
      _
    $region10: #{mlp_encoder_forward.3} parent=5 // pred_check_branch
      %116 = sbr.rel (%p113) target = $region12
    $region11: #{mlp_encoder_forward.3} parent=5 // pred_region
      %s117 = ssub.s32 %s9, 1
      // Predicated region
      $region13: #{mlp_encoder_forward.3} parent=11 // pred_check
        %p118 = pneg %p56
      $region14: #{mlp_encoder_forward.3} parent=11 // pred_check_branch
        %120 = sbr.rel (%p118) target = $region16
      $region15: #{mlp_encoder_forward.3} parent=11 // pred_region
        _
      $region16: #{mlp_encoder_forward.3} parent=11 // pred_fallthru
        _
      // Predicated region
      $region17: #{mlp_encoder_forward.3} parent=11 // pred_check
        %p121 = pneg %p77
      $region18: #{mlp_encoder_forward.3} parent=11 // pred_check_branch
        %123 = sbr.rel (%p121) target = $region20
      $region19: #{mlp_encoder_forward.3} parent=11 // pred_region
        _
      $region20: #{mlp_encoder_forward.3} parent=11 // pred_fallthru
        _
    $region12: #{mlp_encoder_forward.3} parent=5 // pred_fallthru
      _
    %p124 = scmp.lt.s32.totalorder %s9, 2
    // Predicated region
    $region21: #{mlp_encoder_forward.3} parent=5 // pred_check
      %p125 = pneg %p124
    $region22: #{mlp_encoder_forward.3} parent=5 // pred_check_branch
      %127 = sbr.rel (%p125) target = $region24
    $region23: #{mlp_encoder_forward.3} parent=5 // pred_region
      // Predicated region
      $region25: #{mlp_encoder_forward.3} parent=23 // pred_check
        %p128 = pneg %p29
      $region26: #{mlp_encoder_forward.3} parent=23 // pred_check_branch
        %130 = sbr.rel (%p128) target = $region28
      $region27: #{mlp_encoder_forward.3} parent=23 // pred_region
        %p131 = scmp.lt.s32.totalorder %s9, 1
        %s132 = scalar_select %p131, %s9, 1
        %s133 = smul.addr %s132, 8
        %s134 = scalar_lea.vmem %s0, %s133
      $region28: #{mlp_encoder_forward.3} parent=23 // pred_fallthru
        _
    $region24: #{mlp_encoder_forward.3} parent=5 // pred_fallthru
      _
    %p135 = scmp.le.s32.totalorder 1, %s9
    %p136 = scmp.lt.s32.totalorder %s9, 3
    %p137 = pnand %p135, %p136
    %p138 = pneg %p137
    // Predicated region
    $region29: #{mlp_encoder_forward.3} parent=5 // pred_check
      _
    $region30: #{mlp_encoder_forward.3} parent=5 // pred_check_branch
      %140 = sbr.rel (%p137) target = $region32
    $region31: #{mlp_encoder_forward.3} parent=5 // pred_region
      %s141 = ssub.s32 %s9, 1
      %p142 = scmp.lt.s32.totalorder %s14, 1
      %s143 = scalar_select %p142, %s14, 1
      %s144 = smul.addr %s143, 8
      %s145 = scalar_lea.vmem %s0, %s144
      %p146 = pneg %p35
      %p147 = pneg %p32
      %p148 = pneg %p56
      %p149 = pneg %p53
      %p150 = pneg %p77
      %p151 = pneg %p74
      %p152 = pneg %p103
      %p153 = pneg %p100
      %p154 = scmp.lt.s32.totalorder %s14, 1
      %s155 = scalar_select %p154, %s14, 1
      %s156 = smul.addr %s155, 8
      %s157 = scalar_lea.vmem %s3, %s156
      %p158 = scmp.lt.s32.totalorder %s14, 1
      %s159 = scalar_select %p158, %s14, 1
      %s160 = smul.addr %s159, 8
      %s161 = scalar_lea.vmem %s0, %s160
      %p162 = scmp.lt.s32.totalorder %s14, 1
      %s163 = scalar_select %p162, %s14, 1
      %s164 = smul.addr %s163, 8
      %s165 = scalar_lea.vmem %s3, %s164
      %v166 = vld [vmem:[%s161] sm:$0xff]
      %v167 = vld [vmem:[%s2] sm:$0x1]
      %v169 = vperm.slane %v167, 0
      %v171 = vadd.f32 %v166, %v169
      %v172 = vld [vmem:[%s1] sm:$0xff]
      %vm173 = vcmask 64512
      %v175 = vsel %vm173, %v172, 0
      %177 = vmatpush.msra.mxu0 0.0
      %178 = vmatpush.msra.mxu0 0.0
      %179 = vmatpush.msra.mxu0 0.0
      %180 = vmatpush.msra.mxu0 0.0
      %181 = vmatpush.msra.mxu0 0.0
      %182 = vmatpush.msra.mxu0 0.0
      %183 = vmatpush.msra.mxu0 0.0
      %184 = vmatpush.msra.mxu0 0.0
      %185 = vmatpush.msra.mxu0 0.0
      %186 = vmatpush.msra.mxu0 0.0
      %187 = vmatpush.msra.mxu0 0.0
      %188 = vmatpush.msra.mxu0 0.0
      %189 = vmatpush.msra.mxu0 0.0
      %190 = vmatpush.msra.mxu0 0.0
      %191 = vmatpush.msra.mxu0 0.0
      %192 = vmatpush.msra.mxu0 %v171
      %193 = vmatmul.f32.gmra.mxu0 %v175
      %v194 = vpop.f32.mrf.mxu0
      %v195 = vadd.f32 0.0, %v194
      %196 = vdwg.mxu0
      %v197 = vsub.f32 %v166, %v195
      %198 = vst [vmem:[%s165] sm:$0xff] %v197
      %p199 = scmp.lt.s32.totalorder %s14, 1
      %s200 = scalar_select %p199, %s14, 1
      %s201 = smul.addr %s200, 8
      %s202 = scalar_lea.vmem %s3, %s201
      // Predicated region
      $region33: #{mlp_encoder_forward.3} parent=31 // pred_check
        %p203 = pneg %p100
      $region34: #{mlp_encoder_forward.3} parent=31 // pred_check_branch
        %205 = sbr.rel (%p203) target = $region36
      $region35: #{mlp_encoder_forward.3} parent=31 // pred_region
        _
      $region36: #{mlp_encoder_forward.3} parent=31 // pred_fallthru
        _
    $region32: #{mlp_encoder_forward.3} parent=5 // pred_fallthru
      _
    %p206 = scmp.le.s32.totalorder 2, %s9
    // Predicated region
    $region37: #{mlp_encoder_forward.3} parent=5 // pred_check
      %p207 = pneg %p206
    $region38: #{mlp_encoder_forward.3} parent=5 // pred_check_branch
      %209 = sbr.rel (%p207) target = $region40
    $region39: #{mlp_encoder_forward.3} parent=5 // pred_region
      %s210 = ssub.s32 %s9, 2
      // Predicated region
      $region41: #{mlp_encoder_forward.3} parent=39 // pred_check
        %p211 = pneg %p106
      $region42: #{mlp_encoder_forward.3} parent=39 // pred_check_branch
        %213 = sbr.rel (%p211) target = $region44
      $region43: #{mlp_encoder_forward.3} parent=39 // pred_region
        %p214 = scmp.lt.s32.totalorder %s15, 1
        %s215 = scalar_select %p214, %s15, 1
        %s216 = smul.addr %s215, 8
        %s217 = scalar_lea.vmem %s3, %s216
      $region44: #{mlp_encoder_forward.3} parent=39 // pred_fallthru
        _
    $region40: #{mlp_encoder_forward.3} parent=5 // pred_fallthru
      _
  $region6: #{mlp_encoder_forward.3} parent=0 // loop_footer
    %s13 = sadd.s32 1, %s9
  $region7: #{mlp_encoder_forward.3} parent=0 // loop_footer_branch
    %8 = sbr.rel target = $region3
  $region8: #{mlp_encoder_forward.3} parent=0 // loop_exit
    _

</llo_original>
